<compile_context>
chip_gen: v7x
topology: tpu7x:2x2x1
jax: 0.10.0
libtpu: 0.0.40
codegen_flags: <defaults>
</compile_context>

<pallas_src>
import jax
import jax.numpy as jnp
from jax.experimental import pallas as pl
from jax.experimental.pallas import tpu as pltpu

IN_FEATURES = 48 * 4 * 4   # 768
HIDDEN = 100
OUT = 10
HIDDEN_PAD = 128           # lane-dense padding of the 100-wide hidden dims
OUT_PAD = 128              # lane-dense padding of the 10-wide logit dim
TB_MAX = 512               # max batch tile (rows) per grid step
DROPOUT_P = 0.5


def classifier_kernel(x_ref, mask_ref, w1_ref, b1_ref, w2_ref, b2_ref,
                      w3_ref, b3_ref, o_ref):
    # fc1 + relu : (TB, 768) @ (768, 128) -> (TB, 128), f32 accumulation.
    h1 = jnp.dot(x_ref[...], w1_ref[...],
                 preferred_element_type=jnp.float32) + b1_ref[...]
    h1 = jnp.maximum(h1, 0.0)

    # dropout(p=0.5): mask holds {0.0, 2.0} (inverted 1/(1-p) scaling folded in).
    # TODO(synk): dropout is always active (F.dropout default training=True);
    # for eval, pass an all-ones mask from the wrapper.
    h1 = h1.astype(jnp.bfloat16) * mask_ref[...]

    # fc2 + relu
    h2 = jnp.dot(h1, w2_ref[...],
                 preferred_element_type=jnp.float32) + b2_ref[...]
    h2 = jnp.maximum(h2, 0.0)

    # fc3
    logits = jnp.dot(h2.astype(jnp.bfloat16), w3_ref[...],
                     preferred_element_type=jnp.float32) + b3_ref[...]

    # Mask padded logit lanes, then log_softmax over the class axis.
    lane = jax.lax.broadcasted_iota(jnp.int32, logits.shape, 1)
    logits = jnp.where(lane < OUT, logits, -jnp.inf)
    m = jnp.max(logits, axis=1, keepdims=True)
    shifted = logits - m
    lse = jnp.log(jnp.sum(jnp.exp(shifted), axis=1, keepdims=True))
    o_ref[...] = (shifted - lse).astype(o_ref.dtype)


def _round_up(n, m):
    return (n + m - 1) // m * m


def _prepare(x, w1, b1, w2, b2, w3, b3, key):
    """Pad batch / feature dims, cast matmul operands to bf16, build dropout mask."""
    B = x.shape[0]
    tb = _round_up(B, 8) if B <= TB_MAX else TB_MAX
    b_pad = _round_up(B, tb)

    x_p = jnp.pad(x, ((0, b_pad - B), (0, 0))).astype(jnp.bfloat16)

    keep = jax.random.bernoulli(key, 1.0 - DROPOUT_P, (b_pad, HIDDEN_PAD))
    mask = jnp.where(keep, 1.0 / (1.0 - DROPOUT_P), 0.0).astype(jnp.bfloat16)

    w1_p = jnp.pad(w1, ((0, 0), (0, HIDDEN_PAD - HIDDEN))).astype(jnp.bfloat16)
    b1_p = jnp.pad(b1, ((0, 0), (0, HIDDEN_PAD - HIDDEN)))
    w2_p = jnp.pad(w2, ((0, HIDDEN_PAD - HIDDEN), (0, HIDDEN_PAD - HIDDEN))).astype(jnp.bfloat16)
    b2_p = jnp.pad(b2, ((0, 0), (0, HIDDEN_PAD - HIDDEN)))
    w3_p = jnp.pad(w3, ((0, HIDDEN_PAD - HIDDEN), (0, OUT_PAD - OUT))).astype(jnp.bfloat16)
    b3_p = jnp.pad(b3, ((0, 0), (0, OUT_PAD - OUT)))
    return tb, b_pad, x_p, mask, w1_p, b1_p, w2_p, b2_p, w3_p, b3_p


@jax.jit
def classifier_forward(x, w1, b1, w2, b2, w3, b3, key):
    B = x.shape[0]
    tb, b_pad, x_p, mask, w1_p, b1_p, w2_p, b2_p, w3_p, b3_p = _prepare(
        x, w1, b1, w2, b2, w3, b3, key)

    out = pl.pallas_call(
        classifier_kernel,
        out_shape=jax.ShapeDtypeStruct((b_pad, OUT_PAD), jnp.float32),
        grid=(b_pad // tb,),
        in_specs=[
            pl.BlockSpec((tb, IN_FEATURES), lambda i: (i, 0)),           # x tile
            pl.BlockSpec((tb, HIDDEN_PAD), lambda i: (i, 0)),            # dropout mask tile
            pl.BlockSpec((IN_FEATURES, HIDDEN_PAD), lambda i: (0, 0)),   # w1 (resident)
            pl.BlockSpec((1, HIDDEN_PAD), lambda i: (0, 0)),             # b1
            pl.BlockSpec((HIDDEN_PAD, HIDDEN_PAD), lambda i: (0, 0)),    # w2
            pl.BlockSpec((1, HIDDEN_PAD), lambda i: (0, 0)),             # b2
            pl.BlockSpec((HIDDEN_PAD, OUT_PAD), lambda i: (0, 0)),       # w3
            pl.BlockSpec((1, OUT_PAD), lambda i: (0, 0)),                # b3
        ],
        out_specs=pl.BlockSpec((tb, OUT_PAD), lambda i: (i, 0)),
        compiler_params=pltpu.CompilerParams(
            # No cross-step state (mask is precomputed) -> batch tiles are
            # independent; lets v7x shard the grid across both TensorCores.
            dimension_semantics=("parallel",),
        ),
    )(x_p, mask, w1_p, b1_p, w2_p, b2_p, w3_p, b3_p)

    return out[:B, :OUT]


def reference_forward(x, w1, b1, w2, b2, w3, b3, key):
    """Pure-JAX mirror of the kernel math (same padding / bf16 casts / mask)."""
    B = x.shape[0]
    _, _, x_p, mask, w1_p, b1_p, w2_p, b2_p, w3_p, b3_p = _prepare(
        x, w1, b1, w2, b2, w3, b3, key)
    h1 = jnp.maximum(jnp.dot(x_p, w1_p, preferred_element_type=jnp.float32) + b1_p, 0.0)
    h1 = h1.astype(jnp.bfloat16) * mask
    h2 = jnp.maximum(jnp.dot(h1, w2_p, preferred_element_type=jnp.float32) + b2_p, 0.0)
    logits = jnp.dot(h2.astype(jnp.bfloat16), w3_p, preferred_element_type=jnp.float32) + b3_p
    logits = logits[:B, :OUT]
    return jax.nn.log_softmax(logits, axis=1)


def init_params(key):
    """Mimics nn.Linear default init: U(-1/sqrt(fan_in), 1/sqrt(fan_in)).
    Weights stored as (in_features, out_features); biases as (1, out_features)."""
    def linear(key, fan_in, fan_out):
        kw, kb = jax.random.split(key)
        bound = 1.0 / jnp.sqrt(fan_in)
        w = jax.random.uniform(kw, (fan_in, fan_out), jnp.float32, -bound, bound)
        b = jax.random.uniform(kb, (1, fan_out), jnp.float32, -bound, bound)
        return w, b

    k1, k2, k3 = jax.random.split(key, 3)
    w1, b1 = linear(k1, IN_FEATURES, HIDDEN)
    w2, b2 = linear(k2, HIDDEN, HIDDEN)
    w3, b3 = linear(k3, HIDDEN, OUT)
    return w1, b1, w2, b2, w3, b3


if __name__ == "__main__":
    key = jax.random.PRNGKey(0)
    kx, kp, kd = jax.random.split(key, 3)

    # Small deterministic input: batch=8 rows of the 48*4*4=768 flattened features.
    x = jax.random.normal(kx, (8, IN_FEATURES), dtype=jnp.float32)
    params = init_params(kp)

    out = classifier_forward(x, *params, kd)
    out = jax.block_until_ready(out)

    assert out.shape == (8, OUT)
    # log_softmax rows should logsumexp to ~0.
    row_lse = jax.scipy.special.logsumexp(out, axis=1)
    assert jnp.max(jnp.abs(row_lse)) < 1e-4

    # Match the pure-JAX mirror of the kernel math (same mask / bf16 casts).
    ref = reference_forward(x, *params, kd)
    assert jnp.allclose(out, ref, atol=2e-3, rtol=2e-3), float(jnp.max(jnp.abs(out - ref)))

    print("KERNEL_OK")
</pallas_src>

<mosaic_0001>
module attributes {stable_mosaic.version = 11 : i64} {
  func.func @classifier_kernel(%arg0: i32, %arg1: memref<8x768xbf16, #tpu.memory_space<vmem>>, %arg2: memref<8x128xbf16, #tpu.memory_space<vmem>>, %arg3: memref<768x128xbf16, #tpu.memory_space<vmem>>, %arg4: memref<1x128xf32, #tpu.memory_space<vmem>>, %arg5: memref<128x128xbf16, #tpu.memory_space<vmem>>, %arg6: memref<1x128xf32, #tpu.memory_space<vmem>>, %arg7: memref<128x128xbf16, #tpu.memory_space<vmem>>, %arg8: memref<1x128xf32, #tpu.memory_space<vmem>>, %arg9: memref<8x128xf32, #tpu.memory_space<vmem>>) attributes {dimension_semantics = [#tpu.dimension_semantics<parallel>], iteration_bounds = array<i64: 1>, scalar_prefetch = 0 : i64, scratch_operands = 0 : i64, tpu.core_type = #tpu.core_type<tc>, window_params = [{transform_indices = @transform_0, window_bounds = array<i64: 8, 768>}, {transform_indices = @transform_1, window_bounds = array<i64: 8, 128>}, {pipeline_mode = #tpu.pipeline_mode<synchronous>, transform_indices = @transform_2, window_bounds = array<i64: 768, 128>}, {pipeline_mode = #tpu.pipeline_mode<synchronous>, transform_indices = @transform_3, window_bounds = array<i64: 1, 128>}, {pipeline_mode = #tpu.pipeline_mode<synchronous>, transform_indices = @transform_4, window_bounds = array<i64: 128, 128>}, {pipeline_mode = #tpu.pipeline_mode<synchronous>, transform_indices = @transform_5, window_bounds = array<i64: 1, 128>}, {pipeline_mode = #tpu.pipeline_mode<synchronous>, transform_indices = @transform_6, window_bounds = array<i64: 128, 128>}, {pipeline_mode = #tpu.pipeline_mode<synchronous>, transform_indices = @transform_7, window_bounds = array<i64: 1, 128>}, {transform_indices = @transform_8, window_bounds = array<i64: 8, 128>}]} {
    %c0 = arith.constant 0 : index
    %c0_0 = arith.constant 0 : index
    %0 = vector.load %arg1[%c0, %c0_0] : memref<8x768xbf16, #tpu.memory_space<vmem>>, vector<8x768xbf16>
    %c0_1 = arith.constant 0 : index
    %c0_2 = arith.constant 0 : index
    %1 = vector.load %arg3[%c0_1, %c0_2] : memref<768x128xbf16, #tpu.memory_space<vmem>>, vector<768x128xbf16>
    %cst = arith.constant dense<0.000000e+00> : vector<8x128xf32>
    %2 = tpu.matmul %0, %1, %cst {dimension_numbers = #tpu.dot_dimension_numbers<[1], [0], [0], [1], [0, 0, 1, 1], [], []>} : vector<8x768xbf16>, vector<768x128xbf16>, vector<8x128xf32> -> vector<8x128xf32>
    %c0_3 = arith.constant 0 : index
    %c0_4 = arith.constant 0 : index
    %3 = vector.load %arg4[%c0_3, %c0_4] : memref<1x128xf32, #tpu.memory_space<vmem>>, vector<1x128xf32>
    %4 = vector.broadcast %3 : vector<1x128xf32> to vector<8x128xf32>
    %5 = arith.addf %2, %4 : vector<8x128xf32>
    %cst_5 = arith.constant 0.000000e+00 : f32
    %6 = vector.broadcast %cst_5 : f32 to vector<8x128xf32>
    %7 = arith.maximumf %5, %6 : vector<8x128xf32>
    %8 = arith.truncf %7 : vector<8x128xf32> to vector<8x128xbf16>
    %c0_6 = arith.constant 0 : index
    %c0_7 = arith.constant 0 : index
    %9 = vector.load %arg2[%c0_6, %c0_7] : memref<8x128xbf16, #tpu.memory_space<vmem>>, vector<8x128xbf16>
    %10 = arith.mulf %8, %9 : vector<8x128xbf16>
    %c0_8 = arith.constant 0 : index
    %c0_9 = arith.constant 0 : index
    %11 = vector.load %arg5[%c0_8, %c0_9] : memref<128x128xbf16, #tpu.memory_space<vmem>>, vector<128x128xbf16>
    %cst_10 = arith.constant dense<0.000000e+00> : vector<8x128xf32>
    %12 = tpu.matmul %10, %11, %cst_10 {dimension_numbers = #tpu.dot_dimension_numbers<[1], [0], [0], [1], [0, 0, 1, 1], [], []>} : vector<8x128xbf16>, vector<128x128xbf16>, vector<8x128xf32> -> vector<8x128xf32>
    %c0_11 = arith.constant 0 : index
    %c0_12 = arith.constant 0 : index
    %13 = vector.load %arg6[%c0_11, %c0_12] : memref<1x128xf32, #tpu.memory_space<vmem>>, vector<1x128xf32>
    %14 = vector.broadcast %13 : vector<1x128xf32> to vector<8x128xf32>
    %15 = arith.addf %12, %14 : vector<8x128xf32>
    %cst_13 = arith.constant 0.000000e+00 : f32
    %16 = vector.broadcast %cst_13 : f32 to vector<8x128xf32>
    %17 = arith.maximumf %15, %16 : vector<8x128xf32>
    %18 = arith.truncf %17 : vector<8x128xf32> to vector<8x128xbf16>
    %c0_14 = arith.constant 0 : index
    %c0_15 = arith.constant 0 : index
    %19 = vector.load %arg7[%c0_14, %c0_15] : memref<128x128xbf16, #tpu.memory_space<vmem>>, vector<128x128xbf16>
    %cst_16 = arith.constant dense<0.000000e+00> : vector<8x128xf32>
    %20 = tpu.matmul %18, %19, %cst_16 {dimension_numbers = #tpu.dot_dimension_numbers<[1], [0], [0], [1], [0, 0, 1, 1], [], []>} : vector<8x128xbf16>, vector<128x128xbf16>, vector<8x128xf32> -> vector<8x128xf32>
    %c0_17 = arith.constant 0 : index
    %c0_18 = arith.constant 0 : index
    %21 = vector.load %arg8[%c0_17, %c0_18] : memref<1x128xf32, #tpu.memory_space<vmem>>, vector<1x128xf32>
    %22 = vector.broadcast %21 : vector<1x128xf32> to vector<8x128xf32>
    %23 = arith.addf %20, %22 : vector<8x128xf32>
    %24 = tpu.iota {dimensions = array<i32: 1>} : vector<8x128xi32>
    %c10_i32 = arith.constant 10 : i32
    %25 = vector.broadcast %c10_i32 : i32 to vector<8x128xi32>
    %26 = arith.cmpi slt, %24, %25 : vector<8x128xi32>
    %cst_19 = arith.constant 0xFF800000 : f32
    %27 = vector.broadcast %cst_19 : f32 to vector<8x128xf32>
    %28 = arith.select %26, %23, %27 : vector<8x128xi1>, vector<8x128xf32>
    %cst_20 = arith.constant dense<0xFF800000> : vector<8xf32>
    %29 = vector.multi_reduction <maximumf>, %28, %cst_20 [1] : vector<8x128xf32> to vector<8xf32>
    %30 = vector.shape_cast %29 : vector<8xf32> to vector<8x1xf32>
    %31 = vector.broadcast %30 : vector<8x1xf32> to vector<8x128xf32>
    %32 = arith.subf %28, %31 : vector<8x128xf32>
    %33 = math.exp %32 : vector<8x128xf32>
    %cst_21 = arith.constant dense<0.000000e+00> : vector<8xf32>
    %34 = vector.multi_reduction <add>, %33, %cst_21 [1] : vector<8x128xf32> to vector<8xf32>
    %35 = vector.shape_cast %34 : vector<8xf32> to vector<8x1xf32>
    %36 = math.log %35 : vector<8x1xf32>
    %37 = vector.broadcast %36 : vector<8x1xf32> to vector<8x128xf32>
    %38 = arith.subf %32, %37 : vector<8x128xf32>
    %c0_22 = arith.constant 0 : index
    %c0_23 = arith.constant 0 : index
    %39 = vector.load %arg9[%c0_22, %c0_23] : memref<8x128xf32, #tpu.memory_space<vmem>>, vector<8x128xf32>
    tpu.vector_store %arg9[%c0_22, %c0_23], %38 {strides = array<i32>} : memref<8x128xf32, #tpu.memory_space<vmem>>, vector<8x128xf32>,
    return
  }
  func.func @transform_0(%arg0: i32) -> (i32, i32) {
    %c0_i32 = arith.constant 0 : i32
    %c0_i32_0 = arith.constant 0 : i32
    return %arg0, %c0_i32 : i32, i32
  }
  func.func @transform_1(%arg0: i32) -> (i32, i32) {
    %c0_i32 = arith.constant 0 : i32
    %c0_i32_0 = arith.constant 0 : i32
    return %arg0, %c0_i32 : i32, i32
  }
  func.func @transform_2(%arg0: i32) -> (i32, i32) {
    %c0_i32 = arith.constant 0 : i32
    %c0_i32_0 = arith.constant 0 : i32
    %c0_i32_1 = arith.constant 0 : i32
    return %c0_i32, %c0_i32_0 : i32, i32
  }
  func.func @transform_3(%arg0: i32) -> (i32, i32) {
    %c0_i32 = arith.constant 0 : i32
    %c0_i32_0 = arith.constant 0 : i32
    %c0_i32_1 = arith.constant 0 : i32
    return %c0_i32, %c0_i32_0 : i32, i32
  }
  func.func @transform_4(%arg0: i32) -> (i32, i32) {
    %c0_i32 = arith.constant 0 : i32
    %c0_i32_0 = arith.constant 0 : i32
    %c0_i32_1 = arith.constant 0 : i32
    return %c0_i32, %c0_i32_0 : i32, i32
  }
  func.func @transform_5(%arg0: i32) -> (i32, i32) {
    %c0_i32 = arith.constant 0 : i32
    %c0_i32_0 = arith.constant 0 : i32
    %c0_i32_1 = arith.constant 0 : i32
    return %c0_i32, %c0_i32_0 : i32, i32
  }
  func.func @transform_6(%arg0: i32) -> (i32, i32) {
    %c0_i32 = arith.constant 0 : i32
    %c0_i32_0 = arith.constant 0 : i32
    %c0_i32_1 = arith.constant 0 : i32
    return %c0_i32, %c0_i32_0 : i32, i32
  }
  func.func @transform_7(%arg0: i32) -> (i32, i32) {
    %c0_i32 = arith.constant 0 : i32
    %c0_i32_0 = arith.constant 0 : i32
    %c0_i32_1 = arith.constant 0 : i32
    return %c0_i32, %c0_i32_0 : i32, i32
  }
  func.func @transform_8(%arg0: i32) -> (i32, i32) {
    %c0_i32 = arith.constant 0 : i32
    %c0_i32_0 = arith.constant 0 : i32
    return %arg0, %c0_i32 : i32, i32
  }
}

</mosaic_0001>

<llo_original>
// kernel: classifier_forward.1
$region0: #{classifier_forward.1}
  #allocation0 [shape = 'u32[]', space=smem, size = 0x4, offset = 0x4, fixed_abs, tag = 'smem constant byte address 0x4 - core index']
  #allocation1 [shape = 'u32[144,128]{1,0:T(1,128)}', space=vmem, size = 0x12000, scoped, tag = 'internal scratch']
  %s0 = inlined_call_operand.vmem [shape: bf16[8,768], index: 0, kind: input, shape index: {}]
  %s1 = inlined_call_operand.vmem [shape: bf16[8,128], index: 1, kind: input, shape index: {}]
  %s2 = inlined_call_operand.vmem [shape: bf16[768,128], index: 2, kind: input, shape index: {}]
  %s3 = inlined_call_operand.vmem [shape: f32[1,128], index: 3, kind: input, shape index: {}]
  %s4 = inlined_call_operand.vmem [shape: bf16[128,128], index: 4, kind: input, shape index: {}]
  %s5 = inlined_call_operand.vmem [shape: f32[1,128], index: 5, kind: input, shape index: {}]
  %s6 = inlined_call_operand.vmem [shape: bf16[128,128], index: 6, kind: input, shape index: {}]
  %s7 = inlined_call_operand.vmem [shape: f32[1,128], index: 7, kind: input, shape index: {}]
  %s8 = inlined_call_operand.hbm [shape: f32[8,128], index: 8, kind: output, shape index: {}]
  %s9 = sld [smem:[#allocation0]]
  $region42: #{classifier_forward.1} parent=0
    _
  %s11 = ssub.s32 1, %s9
  %s12 = scalar_select 0, %s11, %s9
  $region1: #{classifier_forward.1} parent=0
    #allocation2 [shape = 'u8[4096]{0}', space=vmem, size = 0x1000, scoped, tag = 'output window, operand 0, single buffered']
    #allocation3 [shape = 's32[1]{0}', space=sflag, size = 0x4, scoped, tag = 'scoped memory for classifier_forward.1']
    %13 = vsyncpa [#allocation3], 0
    // Predicated region
    $region2: #{classifier_forward.1} parent=1 // pred_check
      _
    $region3: #{classifier_forward.1} parent=1 // pred_check_branch
      %15 = sbr.rel (0) target = $region5
    $region4: #{classifier_forward.1} parent=1 // pred_region
      _
    $region5: #{classifier_forward.1} parent=1 // pred_fallthru
      _
    // Predicated region
    $region6: #{classifier_forward.1} parent=1 // pred_check
      _
    $region7: #{classifier_forward.1} parent=1 // pred_check_branch
      %17 = sbr.rel (0) target = $region9
    $region8: #{classifier_forward.1} parent=1 // pred_region
      _
    $region9: #{classifier_forward.1} parent=1 // pred_fallthru
      _
    // Predicated region
    $region10: #{classifier_forward.1} parent=1 // pred_check
      _
    $region11: #{classifier_forward.1} parent=1 // pred_check_branch
      %19 = sbr.rel (0) target = $region13
    $region12: #{classifier_forward.1} parent=1 // pred_region
      _
    $region13: #{classifier_forward.1} parent=1 // pred_fallthru
      _
    // Predicated region
    $region14: #{classifier_forward.1} parent=1 // pred_check
      _
    $region15: #{classifier_forward.1} parent=1 // pred_check_branch
      %21 = sbr.rel (0) target = $region17
    $region16: #{classifier_forward.1} parent=1 // pred_region
      _
    $region17: #{classifier_forward.1} parent=1 // pred_fallthru
      _
    // Predicated region
    $region18: #{classifier_forward.1} parent=1 // pred_check
      _
    $region19: #{classifier_forward.1} parent=1 // pred_check_branch
      %23 = sbr.rel (0) target = $region21
    $region20: #{classifier_forward.1} parent=1 // pred_region
      _
    $region21: #{classifier_forward.1} parent=1 // pred_fallthru
      _
    // Predicated region
    $region22: #{classifier_forward.1} parent=1 // pred_check
      _
    $region23: #{classifier_forward.1} parent=1 // pred_check_branch
      %25 = sbr.rel (0) target = $region25
    $region24: #{classifier_forward.1} parent=1 // pred_region
      _
    $region25: #{classifier_forward.1} parent=1 // pred_fallthru
      _
    // Predicated region
    $region26: #{classifier_forward.1} parent=1 // pred_check
      _
    $region27: #{classifier_forward.1} parent=1 // pred_check_branch
      %27 = sbr.rel (0) target = $region29
    $region28: #{classifier_forward.1} parent=1 // pred_region
      _
    $region29: #{classifier_forward.1} parent=1 // pred_fallthru
      _
    // Predicated region
    $region30: #{classifier_forward.1} parent=1 // pred_check
      _
    $region31: #{classifier_forward.1} parent=1 // pred_check_branch
      %29 = sbr.rel (0) target = $region33
    $region32: #{classifier_forward.1} parent=1 // pred_region
      _
    $region33: #{classifier_forward.1} parent=1 // pred_fallthru
      _
    %v31 = vld [vmem:[%s0] sm:$0xff]
    %v32 = vld [vmem:[%s0 + $0x8] sm:$0xff]
    %v33 = vld [vmem:[%s0 + $0x10] sm:$0xff]
    %v34 = vld [vmem:[%s2] sm:$0xf]
    %v35 = vld [vmem:[%s2 + $0x4] sm:$0xf]
    %v36 = vld [vmem:[%s2 + $0x8] sm:$0xf]
    %v37 = vld [vmem:[%s2 + $0xc] sm:$0xf]
    %v38 = vld [vmem:[%s2 + $0x10] sm:$0xf]
    %v39 = vld [vmem:[%s2 + $0x14] sm:$0xf]
    %v40 = vld [vmem:[%s2 + $0x18] sm:$0xf]
    %v41 = vld [vmem:[%s2 + $0x1c] sm:$0xf]
    %v42 = vld [vmem:[%s2 + $0x20] sm:$0xf]
    %v43 = vld [vmem:[%s2 + $0x24] sm:$0xf]
    %v44 = vld [vmem:[%s2 + $0x28] sm:$0xf]
    %v45 = vld [vmem:[%s2 + $0x2c] sm:$0xf]
    %v46 = vld [vmem:[%s2 + $0x30] sm:$0xf]
    %v47 = vld [vmem:[%s2 + $0x34] sm:$0xf]
    %v48 = vld [vmem:[%s2 + $0x38] sm:$0xf]
    %v49 = vld [vmem:[%s2 + $0x3c] sm:$0xf]
    %v50 = vld [vmem:[%s2 + $0x40] sm:$0xf]
    %v51 = vld [vmem:[%s2 + $0x44] sm:$0xf]
    %v52 = vld [vmem:[%s2 + $0x48] sm:$0xf]
    %v53 = vld [vmem:[%s2 + $0x4c] sm:$0xf]
    %v54 = vld [vmem:[%s2 + $0x50] sm:$0xf]
    %v55 = vld [vmem:[%s2 + $0x54] sm:$0xf]
    %v56 = vld [vmem:[%s2 + $0x58] sm:$0xf]
    %v57 = vld [vmem:[%s2 + $0x5c] sm:$0xf]
    %v58 = vld [vmem:[%s2 + $0x60] sm:$0xf]
    %v59 = vld [vmem:[%s2 + $0x64] sm:$0xf]
    %v60 = vld [vmem:[%s2 + $0x68] sm:$0xf]
    %v61 = vld [vmem:[%s2 + $0x6c] sm:$0xf]
    %v62 = vld [vmem:[%s2 + $0x70] sm:$0xf]
    %v63 = vld [vmem:[%s2 + $0x74] sm:$0xf]
    %v64 = vld [vmem:[%s2 + $0x78] sm:$0xf]
    %v65 = vld [vmem:[%s2 + $0x7c] sm:$0xf]
    %v66 = vld [vmem:[%s2 + $0x80] sm:$0xf]
    %v67 = vld [vmem:[%s2 + $0x84] sm:$0xf]
    %v68 = vld [vmem:[%s2 + $0x88] sm:$0xf]
    %v69 = vld [vmem:[%s2 + $0x8c] sm:$0xf]
    %v70 = vld [vmem:[%s2 + $0x90] sm:$0xf]
    %v71 = vld [vmem:[%s2 + $0x94] sm:$0xf]
    %v72 = vld [vmem:[%s2 + $0x98] sm:$0xf]
    %v73 = vld [vmem:[%s2 + $0x9c] sm:$0xf]
    %v74 = vld [vmem:[%s2 + $0xa0] sm:$0xf]
    %v75 = vld [vmem:[%s2 + $0xa4] sm:$0xf]
    %v76 = vld [vmem:[%s2 + $0xa8] sm:$0xf]
    %v77 = vld [vmem:[%s2 + $0xac] sm:$0xf]
    %v78 = vld [vmem:[%s2 + $0xb0] sm:$0xf]
    %v79 = vld [vmem:[%s2 + $0xb4] sm:$0xf]
    %v80 = vld [vmem:[%s2 + $0xb8] sm:$0xf]
    %v81 = vld [vmem:[%s2 + $0xbc] sm:$0xf]
    %v82 = vld [vmem:[%s2 + $0xc0] sm:$0xf]
    %v83 = vld [vmem:[%s2 + $0xc4] sm:$0xf]
    %v84 = vld [vmem:[%s2 + $0xc8] sm:$0xf]
    %v85 = vld [vmem:[%s2 + $0xcc] sm:$0xf]
    %v86 = vld [vmem:[%s2 + $0xd0] sm:$0xf]
    %v87 = vld [vmem:[%s2 + $0xd4] sm:$0xf]
    %v88 = vld [vmem:[%s2 + $0xd8] sm:$0xf]
    %v89 = vld [vmem:[%s2 + $0xdc] sm:$0xf]
    %v90 = vld [vmem:[%s2 + $0xe0] sm:$0xf]
    %v91 = vld [vmem:[%s2 + $0xe4] sm:$0xf]
    %v92 = vld [vmem:[%s2 + $0xe8] sm:$0xf]
    %v93 = vld [vmem:[%s2 + $0xec] sm:$0xf]
    %v94 = vld [vmem:[%s2 + $0xf0] sm:$0xf]
    %v95 = vld [vmem:[%s2 + $0xf4] sm:$0xf]
    %v96 = vld [vmem:[%s2 + $0xf8] sm:$0xf]
    %v97 = vld [vmem:[%s2 + $0xfc] sm:$0xf]
    %v98 = vld [vmem:[%s2 + $0x100] sm:$0xf]
    %v99 = vld [vmem:[%s2 + $0x104] sm:$0xf]
    %v100 = vld [vmem:[%s2 + $0x108] sm:$0xf]
    %v101 = vld [vmem:[%s2 + $0x10c] sm:$0xf]
    %v102 = vld [vmem:[%s2 + $0x110] sm:$0xf]
    %v103 = vld [vmem:[%s2 + $0x114] sm:$0xf]
    %v104 = vld [vmem:[%s2 + $0x118] sm:$0xf]
    %v105 = vld [vmem:[%s2 + $0x11c] sm:$0xf]
    %v106 = vld [vmem:[%s2 + $0x120] sm:$0xf]
    %v107 = vld [vmem:[%s2 + $0x124] sm:$0xf]
    %v108 = vld [vmem:[%s2 + $0x128] sm:$0xf]
    %v109 = vld [vmem:[%s2 + $0x12c] sm:$0xf]
    %v110 = vld [vmem:[%s2 + $0x130] sm:$0xf]
    %v111 = vld [vmem:[%s2 + $0x134] sm:$0xf]
    %v112 = vld [vmem:[%s2 + $0x138] sm:$0xf]
    %v113 = vld [vmem:[%s2 + $0x13c] sm:$0xf]
    %v114 = vld [vmem:[%s2 + $0x140] sm:$0xf]
    %v115 = vld [vmem:[%s2 + $0x144] sm:$0xf]
    %v116 = vld [vmem:[%s2 + $0x148] sm:$0xf]
    %v117 = vld [vmem:[%s2 + $0x14c] sm:$0xf]
    %v118 = vld [vmem:[%s2 + $0x150] sm:$0xf]
    %v119 = vld [vmem:[%s2 + $0x154] sm:$0xf]
    %v120 = vld [vmem:[%s2 + $0x158] sm:$0xf]
    %v121 = vld [vmem:[%s2 + $0x15c] sm:$0xf]
    %v122 = vld [vmem:[%s2 + $0x160] sm:$0xf]
    %v123 = vld [vmem:[%s2 + $0x164] sm:$0xf]
    %v124 = vld [vmem:[%s2 + $0x168] sm:$0xf]
    %v125 = vld [vmem:[%s2 + $0x16c] sm:$0xf]
    %v126 = vld [vmem:[%s2 + $0x170] sm:$0xf]
    %v127 = vld [vmem:[%s2 + $0x174] sm:$0xf]
    %v128 = vld [vmem:[%s2 + $0x178] sm:$0xf]
    %v129 = vld [vmem:[%s2 + $0x17c] sm:$0xf]
    %v130 = vld [vmem:[%s3] sm:$0x1]
    %v132 = vlaneseq
    %v133 = vshrl.u32 %v132, 7
    %v134 = vsub.s32 0, %v133
    %v135 = vrot.slane %v130, %v134
    %v140 = vunpack.c.l.b16 %v31
    %v141 = vunpack.c.h.b16 %v31
    %v142 = vunpack.c.l.b16 %v32
    %v143 = vunpack.c.h.b16 %v32
    %v144 = vunpack.c.l.b16 %v33
    %v145 = vunpack.c.h.b16 %v33
    %v146 = vpack.c.b16 %v140, %v140
    %v147 = vpack.c.b16 %v141, %v141
    %v148 = vpack.c.b16 %v142, %v142
    %v149 = vpack.c.b16 %v143, %v143
    %v150 = vpack.c.b16 %v144, %v144
    %v151 = vpack.c.b16 %v145, %v145
    %v254 = vunpack.c.l.b16 %v34
    %v255 = vunpack.c.l.b16 %v35
    %v256 = vunpack.c.l.b16 %v36
    %v257 = vunpack.c.l.b16 %v37
    %v258 = vunpack.c.l.b16 %v38
    %v259 = vunpack.c.l.b16 %v39
    %v260 = vunpack.c.l.b16 %v40
    %v261 = vunpack.c.l.b16 %v41
    %v262 = vunpack.c.l.b16 %v42
    %v263 = vunpack.c.l.b16 %v43
    %v264 = vunpack.c.l.b16 %v44
    %v265 = vunpack.c.l.b16 %v45
    %v266 = vunpack.c.l.b16 %v46
    %v267 = vunpack.c.l.b16 %v47
    %v268 = vunpack.c.l.b16 %v48
    %v269 = vunpack.c.l.b16 %v49
    %v270 = vunpack.c.l.b16 %v50
    %v271 = vunpack.c.l.b16 %v51
    %v272 = vunpack.c.l.b16 %v52
    %v273 = vunpack.c.l.b16 %v53
    %v274 = vunpack.c.l.b16 %v54
    %v275 = vunpack.c.l.b16 %v55
    %v276 = vunpack.c.l.b16 %v56
    %v277 = vunpack.c.l.b16 %v57
    %v278 = vunpack.c.l.b16 %v58
    %v279 = vunpack.c.l.b16 %v59
    %v280 = vunpack.c.l.b16 %v60
    %v281 = vunpack.c.l.b16 %v61
    %v282 = vunpack.c.l.b16 %v62
    %v283 = vunpack.c.l.b16 %v63
    %v284 = vunpack.c.l.b16 %v64
    %v285 = vunpack.c.l.b16 %v65
    %v286 = vunpack.c.l.b16 %v66
    %v287 = vunpack.c.l.b16 %v67
    %v288 = vunpack.c.l.b16 %v68
    %v289 = vunpack.c.l.b16 %v69
    %v290 = vunpack.c.l.b16 %v70
    %v291 = vunpack.c.l.b16 %v71
    %v292 = vunpack.c.l.b16 %v72
    %v293 = vunpack.c.l.b16 %v73
    %v294 = vunpack.c.l.b16 %v74
    %v295 = vunpack.c.l.b16 %v75
    %v296 = vunpack.c.l.b16 %v76
    %v297 = vunpack.c.l.b16 %v77
    %v298 = vunpack.c.l.b16 %v78
    %v299 = vunpack.c.l.b16 %v79
    %v300 = vunpack.c.l.b16 %v80
    %v301 = vunpack.c.l.b16 %v81
    %v302 = vunpack.c.l.b16 %v82
    %v303 = vunpack.c.l.b16 %v83
    %v304 = vunpack.c.l.b16 %v84
    %v305 = vunpack.c.l.b16 %v85
    %v306 = vunpack.c.l.b16 %v86
    %v307 = vunpack.c.l.b16 %v87
    %v308 = vunpack.c.l.b16 %v88
    %v309 = vunpack.c.l.b16 %v89
    %v310 = vunpack.c.l.b16 %v90
    %v311 = vunpack.c.l.b16 %v91
    %v312 = vunpack.c.l.b16 %v92
    %v313 = vunpack.c.l.b16 %v93
    %v314 = vunpack.c.l.b16 %v94
    %v315 = vunpack.c.l.b16 %v95
    %v316 = vunpack.c.l.b16 %v96
    %v317 = vunpack.c.l.b16 %v97
    %v318 = vunpack.c.l.b16 %v98
    %v319 = vunpack.c.l.b16 %v99
    %v320 = vunpack.c.l.b16 %v100
    %v321 = vunpack.c.l.b16 %v101
    %v322 = vunpack.c.l.b16 %v102
    %v323 = vunpack.c.l.b16 %v103
    %v324 = vunpack.c.l.b16 %v104
    %v325 = vunpack.c.l.b16 %v105
    %v326 = vunpack.c.l.b16 %v106
    %v327 = vunpack.c.l.b16 %v107
    %v328 = vunpack.c.l.b16 %v108
    %v329 = vunpack.c.l.b16 %v109
    %v330 = vunpack.c.l.b16 %v110
    %v331 = vunpack.c.l.b16 %v111
    %v332 = vunpack.c.l.b16 %v112
    %v333 = vunpack.c.l.b16 %v113
    %v334 = vunpack.c.l.b16 %v114
    %v335 = vunpack.c.l.b16 %v115
    %v336 = vunpack.c.l.b16 %v116
    %v337 = vunpack.c.l.b16 %v117
    %v338 = vunpack.c.l.b16 %v118
    %v339 = vunpack.c.l.b16 %v119
    %v340 = vunpack.c.l.b16 %v120
    %v341 = vunpack.c.l.b16 %v121
    %v342 = vunpack.c.l.b16 %v122
    %v343 = vunpack.c.l.b16 %v123
    %v344 = vunpack.c.l.b16 %v124
    %v345 = vunpack.c.l.b16 %v125
    %v346 = vunpack.c.l.b16 %v126
    %v347 = vunpack.c.l.b16 %v127
    %v348 = vunpack.c.l.b16 %v128
    %v349 = vunpack.c.l.b16 %v129
    %v350 = vpack.c.b16 %v255, %v254
    %v351 = vpack.c.b16 %v257, %v256
    %v352 = vpack.c.b16 %v259, %v258
    %v353 = vpack.c.b16 %v261, %v260
    %v354 = vpack.c.b16 %v263, %v262
    %v355 = vpack.c.b16 %v265, %v264
    %v356 = vpack.c.b16 %v267, %v266
    %v357 = vpack.c.b16 %v269, %v268
    %v358 = vpack.c.b16 %v271, %v270
    %v359 = vpack.c.b16 %v273, %v272
    %v360 = vpack.c.b16 %v275, %v274
    %v361 = vpack.c.b16 %v277, %v276
    %v362 = vpack.c.b16 %v279, %v278
    %v363 = vpack.c.b16 %v281, %v280
    %v364 = vpack.c.b16 %v283, %v282
    %v365 = vpack.c.b16 %v285, %v284
    %v366 = vpack.c.b16 %v287, %v286
    %v367 = vpack.c.b16 %v289, %v288
    %v368 = vpack.c.b16 %v291, %v290
    %v369 = vpack.c.b16 %v293, %v292
    %v370 = vpack.c.b16 %v295, %v294
    %v371 = vpack.c.b16 %v297, %v296
    %v372 = vpack.c.b16 %v299, %v298
    %v373 = vpack.c.b16 %v301, %v300
    %v374 = vpack.c.b16 %v303, %v302
    %v375 = vpack.c.b16 %v305, %v304
    %v376 = vpack.c.b16 %v307, %v306
    %v377 = vpack.c.b16 %v309, %v308
    %v378 = vpack.c.b16 %v311, %v310
    %v379 = vpack.c.b16 %v313, %v312
    %v380 = vpack.c.b16 %v315, %v314
    %v381 = vpack.c.b16 %v317, %v316
    %v382 = vpack.c.b16 %v319, %v318
    %v383 = vpack.c.b16 %v321, %v320
    %v384 = vpack.c.b16 %v323, %v322
    %v385 = vpack.c.b16 %v325, %v324
    %v386 = vpack.c.b16 %v327, %v326
    %v387 = vpack.c.b16 %v329, %v328
    %v388 = vpack.c.b16 %v331, %v330
    %v389 = vpack.c.b16 %v333, %v332
    %v390 = vpack.c.b16 %v335, %v334
    %v391 = vpack.c.b16 %v337, %v336
    %v392 = vpack.c.b16 %v339, %v338
    %v393 = vpack.c.b16 %v341, %v340
    %v394 = vpack.c.b16 %v343, %v342
    %v395 = vpack.c.b16 %v345, %v344
    %v396 = vpack.c.b16 %v347, %v346
    %v397 = vpack.c.b16 %v349, %v348
    %446 = vmatprep.subr.bf16.mxu0 0
    %447 = vmatpush1.bf16.msra.mxu0 %v350
    %448 = vmatprep.subr.bf16.mxu0 0
    %449 = vmatpush1.bf16.msra.mxu0 %v351
    %450 = vmatprep.subr.bf16.mxu0 0
    %451 = vmatpush1.bf16.msra.mxu0 %v352
    %452 = vmatprep.subr.bf16.mxu0 0
    %453 = vmatpush1.bf16.msra.mxu0 %v353
    %454 = vmatprep.subr.bf16.mxu0 0
    %455 = vmatpush1.bf16.msra.mxu0 %v354
    %456 = vmatprep.subr.bf16.mxu0 0
    %457 = vmatpush1.bf16.msra.mxu0 %v355
    %458 = vmatprep.subr.bf16.mxu0 0
    %459 = vmatpush1.bf16.msra.mxu0 %v356
    %460 = vmatprep.subr.bf16.mxu0 0
    %461 = vmatpush1.bf16.msra.mxu0 %v357
    %462 = vmatprep.subr.bf16.mxu0 0
    %463 = vmatpush1.bf16.msra.mxu0 %v358
    %464 = vmatprep.subr.bf16.mxu0 0
    %465 = vmatpush1.bf16.msra.mxu0 %v359
    %466 = vmatprep.subr.bf16.mxu0 0
    %467 = vmatpush1.bf16.msra.mxu0 %v360
    %468 = vmatprep.subr.bf16.mxu0 0
    %469 = vmatpush1.bf16.msra.mxu0 %v361
    %470 = vmatprep.subr.bf16.mxu0 0
    %471 = vmatpush1.bf16.msra.mxu0 %v362
    %472 = vmatprep.subr.bf16.mxu0 0
    %473 = vmatpush1.bf16.msra.mxu0 %v363
    %474 = vmatprep.subr.bf16.mxu0 0
    %475 = vmatpush1.bf16.msra.mxu0 %v364
    %476 = vmatprep.subr.bf16.mxu0 0
    %477 = vmatpush1.bf16.msra.mxu0 %v365
    %478 = vmatprep.mubr.bf16.mxu0 %v147
    %479 = vmatmul.mubr.bf16.gmra.mrb[0].mxu0 %v146
    %v480 = vpop.f32.mrb[0].mxu0
    %v481 = vadd.f32 %v135, %v480
    %v482 = vpop.f32.mrb[0].mxu0
    %v483 = vpop.f32.mrb[0].mxu0
    %v484 = vpop.f32.mrb[0].mxu0
    %485 = vdwg.mxu0
    %486 = vmatprep.subr.bf16.mxu0 0
    %487 = vmatpush1.bf16.msra.mxu0 %v366
    %488 = vmatprep.subr.bf16.mxu0 0
    %489 = vmatpush1.bf16.msra.mxu0 %v367
    %490 = vmatprep.subr.bf16.mxu0 0
    %491 = vmatpush1.bf16.msra.mxu0 %v368
    %492 = vmatprep.subr.bf16.mxu0 0
    %493 = vmatpush1.bf16.msra.mxu0 %v369
    %494 = vmatprep.subr.bf16.mxu0 0
    %495 = vmatpush1.bf16.msra.mxu0 %v370
    %496 = vmatprep.subr.bf16.mxu0 0
    %497 = vmatpush1.bf16.msra.mxu0 %v371
    %498 = vmatprep.subr.bf16.mxu0 0
    %499 = vmatpush1.bf16.msra.mxu0 %v372
    %500 = vmatprep.subr.bf16.mxu0 0
    %501 = vmatpush1.bf16.msra.mxu0 %v373
    %502 = vmatprep.subr.bf16.mxu0 0
    %503 = vmatpush1.bf16.msra.mxu0 %v374
    %504 = vmatprep.subr.bf16.mxu0 0
    %505 = vmatpush1.bf16.msra.mxu0 %v375
    %506 = vmatprep.subr.bf16.mxu0 0
    %507 = vmatpush1.bf16.msra.mxu0 %v376
    %508 = vmatprep.subr.bf16.mxu0 0
    %509 = vmatpush1.bf16.msra.mxu0 %v377
    %510 = vmatprep.subr.bf16.mxu0 0
    %511 = vmatpush1.bf16.msra.mxu0 %v378
    %512 = vmatprep.subr.bf16.mxu0 0
    %513 = vmatpush1.bf16.msra.mxu0 %v379
    %514 = vmatprep.subr.bf16.mxu0 0
    %515 = vmatpush1.bf16.msra.mxu0 %v380
    %516 = vmatprep.subr.bf16.mxu0 0
    %517 = vmatpush1.bf16.msra.mxu0 %v381
    %518 = vmatprep.mubr.bf16.mxu0 %v149
    %519 = vmatmul.mubr.bf16.gmra.mrb[0].mxu0 %v148
    %v520 = vpop.f32.mrb[0].mxu0
    %v521 = vadd.f32 %v481, %v520
    %v522 = vpop.f32.mrb[0].mxu0
    %v523 = vpop.f32.mrb[0].mxu0
    %v524 = vpop.f32.mrb[0].mxu0
    %525 = vdwg.mxu0
    %526 = vmatprep.subr.bf16.mxu0 0
    %527 = vmatpush1.bf16.msra.mxu0 %v382
    %528 = vmatprep.subr.bf16.mxu0 0
    %529 = vmatpush1.bf16.msra.mxu0 %v383
    %530 = vmatprep.subr.bf16.mxu0 0
    %531 = vmatpush1.bf16.msra.mxu0 %v384
    %532 = vmatprep.subr.bf16.mxu0 0
    %533 = vmatpush1.bf16.msra.mxu0 %v385
    %534 = vmatprep.subr.bf16.mxu0 0
    %535 = vmatpush1.bf16.msra.mxu0 %v386
    %536 = vmatprep.subr.bf16.mxu0 0
    %537 = vmatpush1.bf16.msra.mxu0 %v387
    %538 = vmatprep.subr.bf16.mxu0 0
    %539 = vmatpush1.bf16.msra.mxu0 %v388
    %540 = vmatprep.subr.bf16.mxu0 0
    %541 = vmatpush1.bf16.msra.mxu0 %v389
    %542 = vmatprep.subr.bf16.mxu0 0
    %543 = vmatpush1.bf16.msra.mxu0 %v390
    %544 = vmatprep.subr.bf16.mxu0 0
    %545 = vmatpush1.bf16.msra.mxu0 %v391
    %546 = vmatprep.subr.bf16.mxu0 0
    %547 = vmatpush1.bf16.msra.mxu0 %v392
    %548 = vmatprep.subr.bf16.mxu0 0
    %549 = vmatpush1.bf16.msra.mxu0 %v393
    %550 = vmatprep.subr.bf16.mxu0 0
    %551 = vmatpush1.bf16.msra.mxu0 %v394
    %552 = vmatprep.subr.bf16.mxu0 0
    %553 = vmatpush1.bf16.msra.mxu0 %v395
    %554 = vmatprep.subr.bf16.mxu0 0
    %555 = vmatpush1.bf16.msra.mxu0 %v396
    %556 = vmatprep.subr.bf16.mxu0 0
    %557 = vmatpush1.bf16.msra.mxu0 %v397
    %558 = vmatprep.mubr.bf16.mxu0 %v151
    %559 = vmatmul.mubr.bf16.gmra.mrb[0].mxu0 %v150
    %v560 = vpop.f32.mrb[0].mxu0
    %v561 = vadd.f32 %v521, %v560
    %v562 = vpop.f32.mrb[0].mxu0
    %v563 = vpop.f32.mrb[0].mxu0
    %v564 = vpop.f32.mrb[0].mxu0
    %565 = vdwg.mxu0
    %v566 = vmax.f32 %v561, 0.0
    %v567 = vpack.c.bf16 %v566, %v566
    %v568 = vld [vmem:[%s1] sm:$0xf]
    %v569 = vmul.bf16 %v567, %v568
    %v570 = vld [vmem:[%s4] sm:$0xf]
    %v571 = vld [vmem:[%s4 + $0x4] sm:$0xf]
    %v572 = vld [vmem:[%s4 + $0x8] sm:$0xf]
    %v573 = vld [vmem:[%s4 + $0xc] sm:$0xf]
    %v574 = vld [vmem:[%s4 + $0x10] sm:$0xf]
    %v575 = vld [vmem:[%s4 + $0x14] sm:$0xf]
    %v576 = vld [vmem:[%s4 + $0x18] sm:$0xf]
    %v577 = vld [vmem:[%s4 + $0x1c] sm:$0xf]
    %v578 = vld [vmem:[%s4 + $0x20] sm:$0xf]
    %v579 = vld [vmem:[%s4 + $0x24] sm:$0xf]
    %v580 = vld [vmem:[%s4 + $0x28] sm:$0xf]
    %v581 = vld [vmem:[%s4 + $0x2c] sm:$0xf]
    %v582 = vld [vmem:[%s4 + $0x30] sm:$0xf]
    %v583 = vld [vmem:[%s4 + $0x34] sm:$0xf]
    %v584 = vld [vmem:[%s4 + $0x38] sm:$0xf]
    %v585 = vld [vmem:[%s4 + $0x3c] sm:$0xf]
    %v586 = vld [vmem:[%s5] sm:$0x1]
    %v588 = vlaneseq
    %v589 = vshrl.u32 %v588, 7
    %v590 = vsub.s32 0, %v589
    %v591 = vrot.slane %v586, %v590
    %v609 = vunpack.c.l.b16 %v570
    %v610 = vunpack.c.l.b16 %v571
    %v611 = vunpack.c.l.b16 %v572
    %v612 = vunpack.c.l.b16 %v573
    %v613 = vunpack.c.l.b16 %v574
    %v614 = vunpack.c.l.b16 %v575
    %v615 = vunpack.c.l.b16 %v576
    %v616 = vunpack.c.l.b16 %v577
    %v617 = vunpack.c.l.b16 %v578
    %v618 = vunpack.c.l.b16 %v579
    %v619 = vunpack.c.l.b16 %v580
    %v620 = vunpack.c.l.b16 %v581
    %v621 = vunpack.c.l.b16 %v582
    %v622 = vunpack.c.l.b16 %v583
    %v623 = vunpack.c.l.b16 %v584
    %v624 = vunpack.c.l.b16 %v585
    %v625 = vpack.c.b16 %v610, %v609
    %v626 = vpack.c.b16 %v612, %v611
    %v627 = vpack.c.b16 %v614, %v613
    %v628 = vpack.c.b16 %v616, %v615
    %v629 = vpack.c.b16 %v618, %v617
    %v630 = vpack.c.b16 %v620, %v619
    %v631 = vpack.c.b16 %v622, %v621
    %v632 = vpack.c.b16 %v624, %v623
    %641 = vmatprep.subr.bf16.mxu0 0
    %642 = vmatpush1.bf16.msra.mxu0 %v625
    %643 = vmatprep.subr.bf16.mxu0 0
    %644 = vmatpush1.bf16.msra.mxu0 %v626
    %645 = vmatprep.subr.bf16.mxu0 0
    %646 = vmatpush1.bf16.msra.mxu0 %v627
    %647 = vmatprep.subr.bf16.mxu0 0
    %648 = vmatpush1.bf16.msra.mxu0 %v628
    %649 = vmatprep.subr.bf16.mxu0 0
    %650 = vmatpush1.bf16.msra.mxu0 %v629
    %651 = vmatprep.subr.bf16.mxu0 0
    %652 = vmatpush1.bf16.msra.mxu0 %v630
    %653 = vmatprep.subr.bf16.mxu0 0
    %654 = vmatpush1.bf16.msra.mxu0 %v631
    %655 = vmatprep.subr.bf16.mxu0 0
    %656 = vmatpush1.bf16.msra.mxu0 %v632
    %657 = vmatprep.subr.bf16.mxu0 0
    %658 = vmatpush1.bf16.msra.mxu0 0
    %659 = vmatprep.subr.bf16.mxu0 0
    %660 = vmatpush1.bf16.msra.mxu0 0
    %661 = vmatprep.subr.bf16.mxu0 0
    %662 = vmatpush1.bf16.msra.mxu0 0
    %663 = vmatprep.subr.bf16.mxu0 0
    %664 = vmatpush1.bf16.msra.mxu0 0
    %665 = vmatprep.subr.bf16.mxu0 0
    %666 = vmatpush1.bf16.msra.mxu0 0
    %667 = vmatprep.subr.bf16.mxu0 0
    %668 = vmatpush1.bf16.msra.mxu0 0
    %669 = vmatprep.subr.bf16.mxu0 0
    %670 = vmatpush1.bf16.msra.mxu0 0
    %671 = vmatprep.subr.bf16.mxu0 0
    %672 = vmatpush1.bf16.msra.mxu0 0
    %673 = vmatprep.mubr.bf16.mxu0 0
    %674 = vmatmul.mubr.bf16.gmra.mrb[0].mxu0 %v569
    %v675 = vpop.f32.mrb[0].mxu0
    %v676 = vadd.f32 %v591, %v675
    %v677 = vpop.f32.mrb[0].mxu0
    %v678 = vpop.f32.mrb[0].mxu0
    %v679 = vpop.f32.mrb[0].mxu0
    %680 = vdwg.mxu0
    %v681 = vmax.f32 %v676, 0.0
    %v682 = vpack.c.bf16 %v681, %v681
    %v683 = vld [vmem:[%s6] sm:$0xf]
    %v684 = vld [vmem:[%s6 + $0x4] sm:$0xf]
    %v685 = vld [vmem:[%s6 + $0x8] sm:$0xf]
    %v686 = vld [vmem:[%s6 + $0xc] sm:$0xf]
    %v687 = vld [vmem:[%s6 + $0x10] sm:$0xf]
    %v688 = vld [vmem:[%s6 + $0x14] sm:$0xf]
    %v689 = vld [vmem:[%s6 + $0x18] sm:$0xf]
    %v690 = vld [vmem:[%s6 + $0x1c] sm:$0xf]
    %v691 = vld [vmem:[%s6 + $0x20] sm:$0xf]
    %v692 = vld [vmem:[%s6 + $0x24] sm:$0xf]
    %v693 = vld [vmem:[%s6 + $0x28] sm:$0xf]
    %v694 = vld [vmem:[%s6 + $0x2c] sm:$0xf]
    %v695 = vld [vmem:[%s6 + $0x30] sm:$0xf]
    %v696 = vld [vmem:[%s6 + $0x34] sm:$0xf]
    %v697 = vld [vmem:[%s6 + $0x38] sm:$0xf]
    %v698 = vld [vmem:[%s6 + $0x3c] sm:$0xf]
    %v699 = vld [vmem:[%s7] sm:$0x1]
    %v701 = vlaneseq
    %v702 = vshrl.u32 %v701, 7
    %v703 = vsub.s32 0, %v702
    %v704 = vrot.slane %v699, %v703
    %v722 = vunpack.c.l.b16 %v683
    %v723 = vunpack.c.l.b16 %v684
    %v724 = vunpack.c.l.b16 %v685
    %v725 = vunpack.c.l.b16 %v686
    %v726 = vunpack.c.l.b16 %v687
    %v727 = vunpack.c.l.b16 %v688
    %v728 = vunpack.c.l.b16 %v689
    %v729 = vunpack.c.l.b16 %v690
    %v730 = vunpack.c.l.b16 %v691
    %v731 = vunpack.c.l.b16 %v692
    %v732 = vunpack.c.l.b16 %v693
    %v733 = vunpack.c.l.b16 %v694
    %v734 = vunpack.c.l.b16 %v695
    %v735 = vunpack.c.l.b16 %v696
    %v736 = vunpack.c.l.b16 %v697
    %v737 = vunpack.c.l.b16 %v698
    %v738 = vpack.c.b16 %v723, %v722
    %v739 = vpack.c.b16 %v725, %v724
    %v740 = vpack.c.b16 %v727, %v726
    %v741 = vpack.c.b16 %v729, %v728
    %v742 = vpack.c.b16 %v731, %v730
    %v743 = vpack.c.b16 %v733, %v732
    %v744 = vpack.c.b16 %v735, %v734
    %v745 = vpack.c.b16 %v737, %v736
    %754 = vmatprep.subr.bf16.mxu0 0
    %755 = vmatpush1.bf16.msra.mxu0 %v738
    %756 = vmatprep.subr.bf16.mxu0 0
    %757 = vmatpush1.bf16.msra.mxu0 %v739
    %758 = vmatprep.subr.bf16.mxu0 0
    %759 = vmatpush1.bf16.msra.mxu0 %v740
    %760 = vmatprep.subr.bf16.mxu0 0
    %761 = vmatpush1.bf16.msra.mxu0 %v741
    %762 = vmatprep.subr.bf16.mxu0 0
    %763 = vmatpush1.bf16.msra.mxu0 %v742
    %764 = vmatprep.subr.bf16.mxu0 0
    %765 = vmatpush1.bf16.msra.mxu0 %v743
    %766 = vmatprep.subr.bf16.mxu0 0
    %767 = vmatpush1.bf16.msra.mxu0 %v744
    %768 = vmatprep.subr.bf16.mxu0 0
    %769 = vmatpush1.bf16.msra.mxu0 %v745
    %770 = vmatprep.subr.bf16.mxu0 0
    %771 = vmatpush1.bf16.msra.mxu0 0
    %772 = vmatprep.subr.bf16.mxu0 0
    %773 = vmatpush1.bf16.msra.mxu0 0
    %774 = vmatprep.subr.bf16.mxu0 0
    %775 = vmatpush1.bf16.msra.mxu0 0
    %776 = vmatprep.subr.bf16.mxu0 0
    %777 = vmatpush1.bf16.msra.mxu0 0
    %778 = vmatprep.subr.bf16.mxu0 0
    %779 = vmatpush1.bf16.msra.mxu0 0
    %780 = vmatprep.subr.bf16.mxu0 0
    %781 = vmatpush1.bf16.msra.mxu0 0
    %782 = vmatprep.subr.bf16.mxu0 0
    %783 = vmatpush1.bf16.msra.mxu0 0
    %784 = vmatprep.subr.bf16.mxu0 0
    %785 = vmatpush1.bf16.msra.mxu0 0
    %786 = vmatprep.mubr.bf16.mxu0 0
    %787 = vmatmul.mubr.bf16.gmra.mrb[0].mxu0 %v682
    %v788 = vpop.f32.mrb[0].mxu0
    %v789 = vadd.f32 %v704, %v788
    %v790 = vpop.f32.mrb[0].mxu0
    %v791 = vpop.f32.mrb[0].mxu0
    %v792 = vpop.f32.mrb[0].mxu0
    %793 = vdwg.mxu0
    %v794 = vlaneseq
    %v795 = vand.u32 %v794, 127
    %vm796 = vcmp.lt.s32.totalorder %v795, 10
    %v797 = vsel %vm796, %v789, -inf
    %798 = vmax.xlane.f32.xlu0 %v797
    %v799 = vpop.xlane.xlu0 %798
    %v800 = vsub.f32 %v797, %v799
    %v801 = vmul.f32 %v800, 1.442695
    %v802 = vpow.pop %v801
    %803 = vadd.xlane.f32.xlu0 %v802
    %v804 = vpop.xlane.xlu0 %803
    %v805 = vlog2.pop %v804
    %v806 = vmul.f32 %v805, 0.6931472
    %v807 = vsub.f32 %v800, %v806
    %808 = vst [vmem:[#allocation2] sm:$0xff] %v807
    // Predicated region
    $region34: #{classifier_forward.1} parent=1 // pred_check
      _
    $region35: #{classifier_forward.1} parent=1 // pred_check_branch
      %810 = sbr.rel (0) target = $region37
    $region36: #{classifier_forward.1} parent=1 // pred_region
      %s812 = ssub.s32 128, 128
      %813 = vsyncadd [#allocation3], %s812
      %s815 = sshll.u32 [#allocation2], 4
      %s816 = int_to_ptr.vmem [resolvable:$true] %s815
      %818 = dma.vmem_to_hbm [thread:$0]  %s816, 128, %s8, [#allocation3]
    $region37: #{classifier_forward.1} parent=1 // pred_fallthru
      _
    // Predicated region
    $region38: #{classifier_forward.1} parent=1 // pred_check
      _
    $region39: #{classifier_forward.1} parent=1 // pred_check_branch
      %820 = sbr.rel (0) target = $region41
    $region40: #{classifier_forward.1} parent=1 // pred_region
      %821 = dma.done [#allocation3], 128
    $region41: #{classifier_forward.1} parent=1 // pred_fallthru
      _
    %822 = vsyncpa [#allocation3], 1

</llo_original>
